<compile_context>
chip_gen: v6e
topology: v6e:2x2x1
jax: 0.10.0
libtpu: 0.0.40
codegen_flags: <defaults>
</compile_context>

<pallas_src>
import functools

import jax
import jax.numpy as jnp
from jax.experimental import pallas as pl
from jax.experimental.pallas import tpu as pltpu


def _round_up(x, m):
    return ((x + m - 1) // m) * m


def _consensus_kernel(emb_ref, w2_ref, b2_ref, wst_ref, cn_ref, b3_ref,
                      emb_out_ref, wts_ref, *,
                      smooth_coef, eps, n_attr, approx_recip):
    """One batch tile per grid step.

    emb_ref : (TB, E_in)   w2_ref : (E_in, E)   b2_ref : (1, E) f32
    wst_ref : (E, Ap)      cn_ref : (Ap, Dp)    b3_ref : (1,) f32 in SMEM
    emb_out_ref : (TB, Dp) f32     wts_ref : (TB, Ap) f32
    """
    f32 = jnp.float32

    # fc2 + tanh for this batch tile: one (TB, E_in) @ (E_in, E) MXU matmul.
    W_v_m = jnp.tanh(
        jnp.dot(emb_ref[...], w2_ref[...], preferred_element_type=f32)
        + b2_ref[...])                                                  # (TB, E) f32

    # fc3 folded: a_s[b, a] = sum_e W_v_m[b, e] * (tanh(fc1(concept))[a, e] * w3[e]) + b3
    mm_dtype = wst_ref.dtype
    a_s = jnp.dot(W_v_m.astype(mm_dtype), wst_ref[...],
                  preferred_element_type=f32) + b3_ref[0]               # (TB, Ap)

    logits = a_s * smooth_coef
    if n_attr < logits.shape[-1]:
        # Mask the lane-padding attribute columns out of the softmax.
        col = jax.lax.broadcasted_iota(jnp.int32, logits.shape, 1)
        logits = jnp.where(col < n_attr, logits, jnp.float32(-1e30))
    logits = logits - jnp.max(logits, axis=-1, keepdims=True)
    e = jnp.exp(logits)
    w = e * pl.reciprocal(jnp.sum(e, axis=-1, keepdims=True), approx=approx_recip)

    # Weighted sum over attributes as (TB, Ap) @ (Ap, Dp) + final l2norm (EUP rsqrt).
    emb_c = jnp.dot(w.astype(cn_ref.dtype), cn_ref[...],
                    preferred_element_type=f32)                         # (TB, Dp)
    emb_c = emb_c * jax.lax.rsqrt(
        jnp.sum(emb_c * emb_c, axis=-1, keepdims=True) + eps)

    emb_out_ref[...] = emb_c
    wts_ref[...] = w


@functools.partial(jax.jit, static_argnames=("smooth_coef", "block_b", "precise"))
def consensus_forward(emb_instance, concept_feature, w1, b1, w2, b2, w3, b3,
                      smooth_coef=10.0, block_b=256, precise=True):
    B, E_in = emb_instance.shape
    A, D = concept_feature.shape
    E = w2.shape[1]
    eps = 1e-8

    # ---- batch-independent concept branch, hoisted out of the per-batch grid ----
    W_s = jnp.tanh(concept_feature @ w1 + b1)                           # (A, E)
    ws_t = (W_s * w3).T                                                 # (E, A) pre-transposed
    c_n = concept_feature * jax.lax.rsqrt(
        jnp.sum(concept_feature * concept_feature, axis=-1, keepdims=True) + eps)

    # Lane-dense padding of attribute / feature axes (full vst instead of masked stores).
    Ap = _round_up(A, 128)
    Dp = _round_up(D, 128)
    if Ap != A:
        ws_t = jnp.pad(ws_t, ((0, 0), (0, Ap - A)))
        c_n = jnp.pad(c_n, ((0, Ap - A), (0, 0)))
    if Dp != D:
        c_n = jnp.pad(c_n, ((0, 0), (0, Dp - D)))

    # ---- batch tile: sublane-aligned, >=2 grid steps when B allows (v7x megacore) ----
    b8 = _round_up(B, 8)
    half = _round_up(-(-b8 // 2), 8)
    tb = max(8, min(_round_up(block_b, 8), half if b8 > 8 else 8))
    bp = _round_up(B, tb)
    emb_p = emb_instance if bp == B else jnp.pad(emb_instance, ((0, bp - B), (0, 0)))

    mm_dtype = jnp.float32 if precise else jnp.bfloat16
    emb_p = emb_p.astype(mm_dtype)
    w2_mm = w2.astype(mm_dtype)
    ws_t = ws_t.astype(mm_dtype)
    c_n = c_n.astype(mm_dtype)
    b2_f = b2.astype(jnp.float32)
    b3_s = jnp.reshape(b3, (1,)).astype(jnp.float32)                    # SMEM scalar

    kernel = functools.partial(
        _consensus_kernel, smooth_coef=float(smooth_coef), eps=eps,
        n_attr=A, approx_recip=(not precise))

    const = dict(pipeline_mode=pl.Buffered(1))   # single-buffer grid-invariant operands
    grid_spec = pltpu.PrefetchScalarGridSpec(
        num_scalar_prefetch=0,
        grid=(bp // tb,),
        in_specs=[
            pl.BlockSpec((tb, E_in), lambda i: (i, 0)),                 # emb_instance tile
            pl.BlockSpec((E_in, E), lambda i: (0, 0), **const),         # fc2 weight (transposed)
            pl.BlockSpec((1, E), lambda i: (0, 0), **const),            # fc2 bias
            pl.BlockSpec((E, Ap), lambda i: (0, 0), **const),           # (W_s * w3)^T, hoisted
            pl.BlockSpec((Ap, Dp), lambda i: (0, 0), **const),          # l2norm(concept), hoisted
            pl.BlockSpec(memory_space=pltpu.MemorySpace.SMEM),          # fc3 bias scalar
        ],
        out_specs=[
            pl.BlockSpec((tb, Dp), lambda i: (i, 0)),                   # emb_concept tile
            pl.BlockSpec((tb, Ap), lambda i: (i, 0)),                   # weights tile
        ],
    )

    itm = jnp.dtype(mm_dtype).itemsize
    working = (2 * tb * E_in * itm                      # emb tile (double-buffered)
               + (E_in * E + E * Ap + Ap * Dp) * itm    # w2 + Ws^T + c_n (single-buffered)
               + E * 4                                  # b2
               + 2 * tb * (Dp + Ap) * 4)                # outputs (double-buffered)
    vmem_limit = int(min(60 * 2**20, max(32 * 2**20, 3 * working)))

    flops = 2 * bp * (E_in * E + E * Ap + Ap * Dp)
    transcendentals = bp * (E + Ap + 2)
    bytes_accessed = (bp * E_in * itm
                      + (E_in * E + E * Ap + Ap * Dp) * itm
                      + E * 4 + 4
                      + bp * (Dp + Ap) * 4)
    cost = pl.CostEstimate(flops=int(flops),
                           transcendentals=int(transcendentals),
                           bytes_accessed=int(bytes_accessed))

    emb_c, wts = pl.pallas_call(
        kernel,
        out_shape=(
            jax.ShapeDtypeStruct((bp, Dp), jnp.float32),
            jax.ShapeDtypeStruct((bp, Ap), jnp.float32),
        ),
        grid_spec=grid_spec,
        compiler_params=pltpu.CompilerParams(
            dimension_semantics=("parallel",),
            vmem_limit_bytes=vmem_limit),
        cost_estimate=cost,
    )(emb_p, w2_mm, b2_f, ws_t, c_n, b3_s)

    return emb_c[:B, :D], wts[:B, :A]


def _reference(emb_instance, concept_feature, w1, b1, w2, b2, w3, b3, smooth_coef=10.0):
    """Pure-JAX reference mirroring the PyTorch forward (tanh path, eval mode)."""
    eps = 1e-8
    W_s = jnp.tanh(concept_feature @ w1 + b1)                           # (A, E)
    W_v_m = jnp.tanh(emb_instance @ w2 + b2)                            # (B, E)
    h_s = W_s[None, :, :] * W_v_m[:, None, :]                           # (B, A, E)
    a_s = jnp.sum(h_s * w3[0][None, None, :], axis=-1) + b3[0, 0]       # (B, A)
    weights = jax.nn.softmax(a_s * smooth_coef, axis=1)                 # (B, A)
    c_n = concept_feature * jax.lax.rsqrt(
        jnp.sum(concept_feature ** 2, axis=-1, keepdims=True) + eps)    # (A, D)
    emb_concept = weights @ c_n                                         # (B, D)
    emb_concept = emb_concept * jax.lax.rsqrt(
        jnp.sum(emb_concept ** 2, axis=-1, keepdims=True) + eps)
    return emb_concept, weights


if __name__ == "__main__":
    # Small shapes consistent with the module's forward:
    #   batch B=16, attribute_num A=8, image_dim D=16, embed_dim E=32.
    # Default block_b gives tb=8 here -> a 2-step "parallel" grid (exercises batch tiling,
    # lane padding and the masked softmax path).
    B, A, D, E = 16, 8, 16, 32
    key = jax.random.PRNGKey(0)
    k_e, k_c, k1, kb1, k2, kb2, k3, kb3 = jax.random.split(key, 8)

    emb_instance = jax.random.normal(k_e, (B, E), dtype=jnp.float32)
    concept_feature = jax.random.normal(k_c, (A, D), dtype=jnp.float32)

    # Linear parameters, stored transposed (in_dim, out_dim); fc3 weight as a (1, E) row.
    w1 = 0.1 * jax.random.normal(k1, (D, E), dtype=jnp.float32)
    b1 = 0.1 * jax.random.normal(kb1, (1, E), dtype=jnp.float32)
    w2 = 0.1 * jax.random.normal(k2, (E, E), dtype=jnp.float32)
    b2 = 0.1 * jax.random.normal(kb2, (1, E), dtype=jnp.float32)
    w3 = 0.1 * jax.random.normal(k3, (1, E), dtype=jnp.float32)
    b3 = 0.1 * jax.random.normal(kb3, (1, 1), dtype=jnp.float32)

    emb_ref, wts_ref = _reference(emb_instance, concept_feature, w1, b1, w2, b2, w3, b3)

    # Exact (f32) path.
    emb_concept, weights = consensus_forward(
        emb_instance, concept_feature, w1, b1, w2, b2, w3, b3)
    jax.block_until_ready((emb_concept, weights))
    assert emb_concept.shape == (B, D) and weights.shape == (B, A)
    assert jnp.allclose(emb_concept, emb_ref, atol=1e-5, rtol=1e-4)
    assert jnp.allclose(weights, wts_ref, atol=1e-5, rtol=1e-4)

    # Low-precision path (bf16 MXU operands + approx reciprocal) — loose tolerance.
    emb_lp, wts_lp = consensus_forward(
        emb_instance, concept_feature, w1, b1, w2, b2, w3, b3, precise=False)
    jax.block_until_ready((emb_lp, wts_lp))
    assert jnp.allclose(emb_lp, emb_ref, atol=0.1, rtol=0.1)
    assert jnp.allclose(wts_lp, wts_ref, atol=0.1, rtol=0.1)

    print("KERNEL_OK")
</pallas_src>

<mosaic_0001>
module attributes {stable_mosaic.version = 11 : i64} {
  func.func @_consensus_kernel(%arg0: i32, %arg1: memref<8x32xf32, #tpu.memory_space<vmem>>, %arg2: memref<32x32xf32, #tpu.memory_space<vmem>>, %arg3: memref<1x32xf32, #tpu.memory_space<vmem>>, %arg4: memref<32x128xf32, #tpu.memory_space<vmem>>, %arg5: memref<128x128xf32, #tpu.memory_space<vmem>>, %arg6: memref<1xf32, #tpu.memory_space<smem>>, %arg7: memref<8x128xf32, #tpu.memory_space<vmem>>, %arg8: memref<8x128xf32, #tpu.memory_space<vmem>>) attributes {dimension_semantics = [#tpu.dimension_semantics<parallel>], iteration_bounds = array<i64: 2>, scalar_prefetch = 0 : i64, scratch_operands = 0 : i64, tpu.core_type = #tpu.core_type<tc>, window_params = [{transform_indices = @transform_0, window_bounds = array<i64: 8, 32>}, {pipeline_mode = #tpu.pipeline_mode<synchronous>, transform_indices = @transform_1, window_bounds = array<i64: 32, 32>}, {pipeline_mode = #tpu.pipeline_mode<synchronous>, transform_indices = @transform_2, window_bounds = array<i64: 1, 32>}, {pipeline_mode = #tpu.pipeline_mode<synchronous>, transform_indices = @transform_3, window_bounds = array<i64: 32, 128>}, {pipeline_mode = #tpu.pipeline_mode<synchronous>, transform_indices = @transform_4, window_bounds = array<i64: 128, 128>}, {transform_indices = @transform_5, window_bounds = array<i64: 1>}, {transform_indices = @transform_6, window_bounds = array<i64: 8, 128>}, {transform_indices = @transform_7, window_bounds = array<i64: 8, 128>}]} {
    %c0 = arith.constant 0 : index
    %c0_0 = arith.constant 0 : index
    %0 = vector.load %arg1[%c0, %c0_0] : memref<8x32xf32, #tpu.memory_space<vmem>>, vector<8x32xf32>
    %c0_1 = arith.constant 0 : index
    %c0_2 = arith.constant 0 : index
    %1 = vector.load %arg2[%c0_1, %c0_2] : memref<32x32xf32, #tpu.memory_space<vmem>>, vector<32x32xf32>
    %cst = arith.constant dense<0.000000e+00> : vector<8x32xf32>
    %2 = tpu.matmul %0, %1, %cst {dimension_numbers = #tpu.dot_dimension_numbers<[1], [0], [0], [1], [0, 0, 1, 1], [], []>} : vector<8x32xf32>, vector<32x32xf32>, vector<8x32xf32> -> vector<8x32xf32>
    %c0_3 = arith.constant 0 : index
    %c0_4 = arith.constant 0 : index
    %3 = vector.load %arg3[%c0_3, %c0_4] : memref<1x32xf32, #tpu.memory_space<vmem>>, vector<1x32xf32>
    %4 = vector.broadcast %3 : vector<1x32xf32> to vector<8x32xf32>
    %5 = arith.addf %2, %4 : vector<8x32xf32>
    %6 = math.tanh %5 : vector<8x32xf32>
    %c0_5 = arith.constant 0 : index
    %c0_6 = arith.constant 0 : index
    %7 = vector.load %arg4[%c0_5, %c0_6] : memref<32x128xf32, #tpu.memory_space<vmem>>, vector<32x128xf32>
    %cst_7 = arith.constant dense<0.000000e+00> : vector<8x128xf32>
    %8 = tpu.matmul %6, %7, %cst_7 {dimension_numbers = #tpu.dot_dimension_numbers<[1], [0], [0], [1], [0, 0, 1, 1], [], []>} : vector<8x32xf32>, vector<32x128xf32>, vector<8x128xf32> -> vector<8x128xf32>
    %c0_8 = arith.constant 0 : index
    %9 = memref.load %arg6[%c0_8] : memref<1xf32, #tpu.memory_space<smem>>
    %10 = vector.broadcast %9 : f32 to vector<8x128xf32>
    %11 = arith.addf %8, %10 : vector<8x128xf32>
    %cst_9 = arith.constant 1.000000e+01 : f32
    %12 = vector.broadcast %cst_9 : f32 to vector<8x128xf32>
    %13 = arith.mulf %11, %12 : vector<8x128xf32>
    %14 = tpu.iota {dimensions = array<i32: 1>} : vector<8x128xi32>
    %c8_i32 = arith.constant 8 : i32
    %15 = vector.broadcast %c8_i32 : i32 to vector<8x128xi32>
    %16 = arith.cmpi slt, %14, %15 : vector<8x128xi32>
    %cst_10 = arith.constant -1.000000e+30 : f32
    %17 = vector.broadcast %cst_10 : f32 to vector<8x128xf32>
    %18 = arith.select %16, %13, %17 : vector<8x128xi1>, vector<8x128xf32>
    %cst_11 = arith.constant dense<0xFF800000> : vector<8xf32>
    %19 = vector.multi_reduction <maximumf>, %18, %cst_11 [1] : vector<8x128xf32> to vector<8xf32>
    %20 = vector.shape_cast %19 : vector<8xf32> to vector<8x1xf32>
    %21 = vector.broadcast %20 : vector<8x1xf32> to vector<8x128xf32>
    %22 = arith.subf %18, %21 : vector<8x128xf32>
    %23 = math.exp %22 : vector<8x128xf32>
    %cst_12 = arith.constant dense<0.000000e+00> : vector<8xf32>
    %24 = vector.multi_reduction <add>, %23, %cst_12 [1] : vector<8x128xf32> to vector<8xf32>
    %25 = vector.shape_cast %24 : vector<8xf32> to vector<8x1xf32>
    %26 = tpu.reciprocal %25 : vector<8x1xf32> -> vector<8x1xf32>
    %27 = vector.broadcast %26 : vector<8x1xf32> to vector<8x128xf32>
    %28 = arith.mulf %23, %27 : vector<8x128xf32>
    %c0_13 = arith.constant 0 : index
    %c0_14 = arith.constant 0 : index
    %29 = vector.load %arg5[%c0_13, %c0_14] : memref<128x128xf32, #tpu.memory_space<vmem>>, vector<128x128xf32>
    %cst_15 = arith.constant dense<0.000000e+00> : vector<8x128xf32>
    %30 = tpu.matmul %28, %29, %cst_15 {dimension_numbers = #tpu.dot_dimension_numbers<[1], [0], [0], [1], [0, 0, 1, 1], [], []>} : vector<8x128xf32>, vector<128x128xf32>, vector<8x128xf32> -> vector<8x128xf32>
    %31 = arith.mulf %30, %30 : vector<8x128xf32>
    %cst_16 = arith.constant dense<0.000000e+00> : vector<8xf32>
    %32 = vector.multi_reduction <add>, %31, %cst_16 [1] : vector<8x128xf32> to vector<8xf32>
    %33 = vector.shape_cast %32 : vector<8xf32> to vector<8x1xf32>
    %cst_17 = arith.constant 9.99999993E-9 : f32
    %34 = vector.broadcast %cst_17 : f32 to vector<8x1xf32>
    %35 = arith.addf %33, %34 : vector<8x1xf32>
    %36 = math.rsqrt %35 : vector<8x1xf32>
    %37 = vector.broadcast %36 : vector<8x1xf32> to vector<8x128xf32>
    %38 = arith.mulf %30, %37 : vector<8x128xf32>
    %c0_18 = arith.constant 0 : index
    %c0_19 = arith.constant 0 : index
    %39 = vector.load %arg7[%c0_18, %c0_19] : memref<8x128xf32, #tpu.memory_space<vmem>>, vector<8x128xf32>
    tpu.vector_store %arg7[%c0_18, %c0_19], %38 {strides = array<i32>} : memref<8x128xf32, #tpu.memory_space<vmem>>, vector<8x128xf32>,
    %c0_20 = arith.constant 0 : index
    %c0_21 = arith.constant 0 : index
    %40 = vector.load %arg8[%c0_20, %c0_21] : memref<8x128xf32, #tpu.memory_space<vmem>>, vector<8x128xf32>
    tpu.vector_store %arg8[%c0_20, %c0_21], %28 {strides = array<i32>} : memref<8x128xf32, #tpu.memory_space<vmem>>, vector<8x128xf32>,
    return
  }
  func.func @transform_0(%arg0: i32) -> (i32, i32) {
    %c0_i32 = arith.constant 0 : i32
    %c0_i32_0 = arith.constant 0 : i32
    return %arg0, %c0_i32 : i32, i32
  }
  func.func @transform_1(%arg0: i32) -> (i32, i32) {
    %c0_i32 = arith.constant 0 : i32
    %c0_i32_0 = arith.constant 0 : i32
    %c0_i32_1 = arith.constant 0 : i32
    return %c0_i32, %c0_i32_0 : i32, i32
  }
  func.func @transform_2(%arg0: i32) -> (i32, i32) {
    %c0_i32 = arith.constant 0 : i32
    %c0_i32_0 = arith.constant 0 : i32
    %c0_i32_1 = arith.constant 0 : i32
    return %c0_i32, %c0_i32_0 : i32, i32
  }
  func.func @transform_3(%arg0: i32) -> (i32, i32) {
    %c0_i32 = arith.constant 0 : i32
    %c0_i32_0 = arith.constant 0 : i32
    %c0_i32_1 = arith.constant 0 : i32
    return %c0_i32, %c0_i32_0 : i32, i32
  }
  func.func @transform_4(%arg0: i32) -> (i32, i32) {
    %c0_i32 = arith.constant 0 : i32
    %c0_i32_0 = arith.constant 0 : i32
    %c0_i32_1 = arith.constant 0 : i32
    return %c0_i32, %c0_i32_0 : i32, i32
  }
  func.func @transform_5(%arg0: i32) -> i32 {
    %c0_i32 = arith.constant 0 : i32
    %c0_i32_0 = arith.constant 0 : i32
    return %c0_i32 : i32
  }
  func.func @transform_6(%arg0: i32) -> (i32, i32) {
    %c0_i32 = arith.constant 0 : i32
    %c0_i32_0 = arith.constant 0 : i32
    return %arg0, %c0_i32 : i32, i32
  }
  func.func @transform_7(%arg0: i32) -> (i32, i32) {
    %c0_i32 = arith.constant 0 : i32
    %c0_i32_0 = arith.constant 0 : i32
    return %arg0, %c0_i32 : i32, i32
  }
}

</mosaic_0001>

<llo_original>
// kernel: consensus_forward.1
$region0: #{consensus_forward.1}
  #allocation0 [shape = 'u32[]', space=smem, size = 0x4, offset = 0x4, fixed_abs, tag = 'smem constant byte address 0x4 - core index']
  #allocation1 [shape = 'u32[144,128]{1,0:T(1,128)}', space=vmem, size = 0x12000, scoped, tag = 'internal scratch']
  #allocation2 [shape = 'f32[1]{0:T(128)S(6)}', space=smem, size = 0x200, scoped, tag = 'scoped memory for consensus_forward.1']
  %s0 = inlined_call_operand.vmem [shape: f32[16,32], index: 0, kind: input, shape index: {}]
  %s1 = inlined_call_operand.vmem [shape: f32[32,32], index: 1, kind: input, shape index: {}]
  %s2 = inlined_call_operand.vmem [shape: f32[1,32], index: 2, kind: input, shape index: {}]
  %s3 = inlined_call_operand.vmem [shape: f32[32,128], index: 3, kind: input, shape index: {}]
  %s4 = inlined_call_operand.vmem [shape: f32[128,128], index: 4, kind: input, shape index: {}]
  %s5 = inlined_call_operand.<no memory space> [shape: f32[1], index: 5, kind: input, shape index: {}]
  %s6 = inlined_call_operand.hbm [shape: f32[16,128], index: 6, kind: output, shape index: {0}]
  %s7 = inlined_call_operand.vmem [shape: f32[16,128], index: 7, kind: output, shape index: {1}]
  %8 = xla_tuple %s6, %s7
  %s9 = sld [smem:[#allocation0]]
  $region65: #{consensus_forward.1} parent=0
    _
  %s11 = ssub.s32 1, %s9
  %s12 = scalar_select 0, %s11, %s9
  %13 = sst [smem:[#allocation2]] %s5
  $region1: #{consensus_forward.1} parent=0
    #allocation3 [shape = 'u8[8192]{0}', space=vmem, size = 0x2000, scoped, tag = 'output window, operand 0']
    #allocation4 [shape = 's32[2]{0}', space=sflag, size = 0x8, scoped, tag = 'scoped memory for consensus_forward.1']
    %14 = vsyncpa [#allocation4], 0
    %s15 = scalar_lea.sflag [#allocation4], 1
    %16 = vsyncpa %s15, 0
    loop: start=0, step=1, limit=4
    $region2: #{consensus_forward.1} parent=1 // loop_pre_header
      _
    $region3: #{consensus_forward.1} parent=1 // loop_header
      %s18 = sphi 0, %s22
      %p19 = scmp.ge.s32.totalorder %s18, 4
      %s28 = sphi 0, %s30
      %s31 = sphi 0, %s28
      %s32 = sphi 0, %s31
      %s48 = sphi 0, %s32
      %s52 = sphi 0, %s52
      %s54 = sphi 0, %s52
      %s55 = sphi 0, %s54
      %s69 = sphi 0, %s55
      %s73 = sphi 0, %s73
      %s75 = sphi 0, %s73
      %s76 = sphi 0, %s75
      %s90 = sphi 0, %s76
      %s94 = sphi 0, %s94
      %s96 = sphi 0, %s94
      %s97 = sphi 0, %s96
      %s111 = sphi 0, %s97
      %s115 = sphi 0, %s115
      %s117 = sphi 0, %s115
      %s118 = sphi 0, %s117
      %s132 = sphi 0, %s118
      %s136 = sphi 0, %s136
      %s138 = sphi 0, %s136
      %s139 = sphi 0, %s138
      %s153 = sphi 0, %s139
      %s159 = sphi 0, %s161
      %s162 = sphi 0, %s159
      %s163 = sphi 0, %s162
      %s179 = sphi 0, %s163
      %s185 = sphi 0, %s187
      %s188 = sphi 0, %s185
      %s189 = sphi 0, %s188
      %s205 = sphi 0, %s189
    $region4: #{consensus_forward.1} parent=1 // loop_header_branch
      %21 = sbr.rel (%p19) target = $region8
    $region5: #{consensus_forward.1} parent=1 // loop_body
      %s23 = ssub.s32 %s18, 1
      %s24 = ssub.s32 %s18, 2
      %s25 = sadd.s32 %s18, 1
      %s26 = ssub.s32 %s18, %s25
      %p27 = scmp.eq.s32.totalorder %s26, 0
      %s29 = sadd.s32 %s28, 1
      %s30 = scalar_select %p27, %s28, %s29
      %p33 = pneg %p27
      %p34 = scmp.eq.s32.totalorder %s18, 1
      %p35 = por %p33, %p34
      %p36 = scmp.ne.s32.totalorder %s28, %s31
      %p37 = scmp.eq.s32.totalorder %s18, 0
      %p38 = por %p36, %p37
      %p39 = scmp.ne.s32.totalorder %s28, %s31
      %p40 = scmp.eq.s32.totalorder %s23, 1
      %p41 = por %p39, %p40
      %p42 = scmp.ne.s32.totalorder %s31, %s32
      %p43 = scmp.eq.s32.totalorder %s23, 0
      %p44 = por %p42, %p43
      %p45 = scmp.ne.s32.totalorder %s31, %s32
      %p46 = scmp.eq.s32.totalorder %s24, 1
      %p47 = por %p45, %p46
      %p49 = scmp.ne.s32.totalorder %s32, %s48
      %p50 = scmp.eq.s32.totalorder %s24, 0
      %p51 = por %p49, %p50
      %s53 = sadd.s32 %s52, 1
      %p56 = scmp.eq.s32.totalorder %s18, 1
      %p57 = scmp.ne.s32.totalorder %s52, %s54
      %p58 = scmp.eq.s32.totalorder %s18, 0
      %p59 = por %p57, %p58
      %p60 = scmp.ne.s32.totalorder %s52, %s54
      %p61 = scmp.eq.s32.totalorder %s23, 1
      %p62 = por %p60, %p61
      %p63 = scmp.ne.s32.totalorder %s54, %s55
      %p64 = scmp.eq.s32.totalorder %s23, 0
      %p65 = por %p63, %p64
      %p66 = scmp.ne.s32.totalorder %s54, %s55
      %p67 = scmp.eq.s32.totalorder %s24, 1
      %p68 = por %p66, %p67
      %p70 = scmp.ne.s32.totalorder %s55, %s69
      %p71 = scmp.eq.s32.totalorder %s24, 0
      %p72 = por %p70, %p71
      %s74 = sadd.s32 %s73, 1
      %p77 = scmp.eq.s32.totalorder %s18, 1
      %p78 = scmp.ne.s32.totalorder %s73, %s75
      %p79 = scmp.eq.s32.totalorder %s18, 0
      %p80 = por %p78, %p79
      %p81 = scmp.ne.s32.totalorder %s73, %s75
      %p82 = scmp.eq.s32.totalorder %s23, 1
      %p83 = por %p81, %p82
      %p84 = scmp.ne.s32.totalorder %s75, %s76
      %p85 = scmp.eq.s32.totalorder %s23, 0
      %p86 = por %p84, %p85
      %p87 = scmp.ne.s32.totalorder %s75, %s76
      %p88 = scmp.eq.s32.totalorder %s24, 1
      %p89 = por %p87, %p88
      %p91 = scmp.ne.s32.totalorder %s76, %s90
      %p92 = scmp.eq.s32.totalorder %s24, 0
      %p93 = por %p91, %p92
      %s95 = sadd.s32 %s94, 1
      %p98 = scmp.eq.s32.totalorder %s18, 1
      %p99 = scmp.ne.s32.totalorder %s94, %s96
      %p100 = scmp.eq.s32.totalorder %s18, 0
      %p101 = por %p99, %p100
      %p102 = scmp.ne.s32.totalorder %s94, %s96
      %p103 = scmp.eq.s32.totalorder %s23, 1
      %p104 = por %p102, %p103
      %p105 = scmp.ne.s32.totalorder %s96, %s97
      %p106 = scmp.eq.s32.totalorder %s23, 0
      %p107 = por %p105, %p106
      %p108 = scmp.ne.s32.totalorder %s96, %s97
      %p109 = scmp.eq.s32.totalorder %s24, 1
      %p110 = por %p108, %p109
      %p112 = scmp.ne.s32.totalorder %s97, %s111
      %p113 = scmp.eq.s32.totalorder %s24, 0
      %p114 = por %p112, %p113
      %s116 = sadd.s32 %s115, 1
      %p119 = scmp.eq.s32.totalorder %s18, 1
      %p120 = scmp.ne.s32.totalorder %s115, %s117
      %p121 = scmp.eq.s32.totalorder %s18, 0
      %p122 = por %p120, %p121
      %p123 = scmp.ne.s32.totalorder %s115, %s117
      %p124 = scmp.eq.s32.totalorder %s23, 1
      %p125 = por %p123, %p124
      %p126 = scmp.ne.s32.totalorder %s117, %s118
      %p127 = scmp.eq.s32.totalorder %s23, 0
      %p128 = por %p126, %p127
      %p129 = scmp.ne.s32.totalorder %s117, %s118
      %p130 = scmp.eq.s32.totalorder %s24, 1
      %p131 = por %p129, %p130
      %p133 = scmp.ne.s32.totalorder %s118, %s132
      %p134 = scmp.eq.s32.totalorder %s24, 0
      %p135 = por %p133, %p134
      %s137 = sadd.s32 %s136, 1
      %p140 = scmp.eq.s32.totalorder %s18, 1
      %p141 = scmp.ne.s32.totalorder %s136, %s138
      %p142 = scmp.eq.s32.totalorder %s18, 0
      %p143 = por %p141, %p142
      %p144 = scmp.ne.s32.totalorder %s136, %s138
      %p145 = scmp.eq.s32.totalorder %s23, 1
      %p146 = por %p144, %p145
      %p147 = scmp.ne.s32.totalorder %s138, %s139
      %p148 = scmp.eq.s32.totalorder %s23, 0
      %p149 = por %p147, %p148
      %p150 = scmp.ne.s32.totalorder %s138, %s139
      %p151 = scmp.eq.s32.totalorder %s24, 1
      %p152 = por %p150, %p151
      %p154 = scmp.ne.s32.totalorder %s139, %s153
      %p155 = scmp.eq.s32.totalorder %s24, 0
      %p156 = por %p154, %p155
      %s157 = ssub.s32 %s18, %s25
      %p158 = scmp.eq.s32.totalorder %s157, 0
      %s160 = sadd.s32 %s159, 1
      %s161 = scalar_select %p158, %s159, %s160
      %p164 = pneg %p158
      %p165 = scmp.eq.s32.totalorder %s18, 1
      %p166 = por %p164, %p165
      %p167 = scmp.ne.s32.totalorder %s159, %s162
      %p168 = scmp.eq.s32.totalorder %s18, 0
      %p169 = por %p167, %p168
      %p170 = scmp.ne.s32.totalorder %s159, %s162
      %p171 = scmp.eq.s32.totalorder %s23, 1
      %p172 = por %p170, %p171
      %p173 = scmp.ne.s32.totalorder %s162, %s163
      %p174 = scmp.eq.s32.totalorder %s23, 0
      %p175 = por %p173, %p174
      %p176 = scmp.ne.s32.totalorder %s162, %s163
      %p177 = scmp.eq.s32.totalorder %s24, 1
      %p178 = por %p176, %p177
      %p180 = scmp.ne.s32.totalorder %s163, %s179
      %p181 = scmp.eq.s32.totalorder %s24, 0
      %p182 = por %p180, %p181
      %s183 = ssub.s32 %s18, %s25
      %p184 = scmp.eq.s32.totalorder %s183, 0
      %s186 = sadd.s32 %s185, 1
      %s187 = scalar_select %p184, %s185, %s186
      %p190 = pneg %p184
      %p191 = scmp.eq.s32.totalorder %s18, 1
      %p192 = por %p190, %p191
      %p193 = scmp.ne.s32.totalorder %s185, %s188
      %p194 = scmp.eq.s32.totalorder %s18, 0
      %p195 = por %p193, %p194
      %p196 = scmp.ne.s32.totalorder %s185, %s188
      %p197 = scmp.eq.s32.totalorder %s23, 1
      %p198 = por %p196, %p197
      %p199 = scmp.ne.s32.totalorder %s188, %s189
      %p200 = scmp.eq.s32.totalorder %s23, 0
      %p201 = por %p199, %p200
      %p202 = scmp.ne.s32.totalorder %s188, %s189
      %p203 = scmp.eq.s32.totalorder %s24, 1
      %p204 = por %p202, %p203
      %p206 = scmp.ne.s32.totalorder %s189, %s205
      %p207 = scmp.eq.s32.totalorder %s24, 0
      %p208 = por %p206, %p207
      %p209 = scmp.le.s32.totalorder 1, %s18
      %p210 = scmp.lt.s32.totalorder %s18, 3
      %p211 = pnand %p209, %p210
      %p212 = pneg %p211
      // Predicated region
      $region9: #{consensus_forward.1} parent=5 // pred_check
        _
      $region10: #{consensus_forward.1} parent=5 // pred_check_branch
        %214 = sbr.rel (%p211) target = $region12
      $region11: #{consensus_forward.1} parent=5 // pred_region
        %s215 = ssub.s32 %s18, 1
        // Predicated region
        $region13: #{consensus_forward.1} parent=11 // pred_check
          %p216 = pneg %p65
        $region14: #{consensus_forward.1} parent=11 // pred_check_branch
          %218 = sbr.rel (%p216) target = $region16
        $region15: #{consensus_forward.1} parent=11 // pred_region
          _
        $region16: #{consensus_forward.1} parent=11 // pred_fallthru
          _
        // Predicated region
        $region17: #{consensus_forward.1} parent=11 // pred_check
          %p219 = pneg %p86
        $region18: #{consensus_forward.1} parent=11 // pred_check_branch
          %221 = sbr.rel (%p219) target = $region20
        $region19: #{consensus_forward.1} parent=11 // pred_region
          _
        $region20: #{consensus_forward.1} parent=11 // pred_fallthru
          _
        // Predicated region
        $region21: #{consensus_forward.1} parent=11 // pred_check
          %p222 = pneg %p107
        $region22: #{consensus_forward.1} parent=11 // pred_check_branch
          %224 = sbr.rel (%p222) target = $region24
        $region23: #{consensus_forward.1} parent=11 // pred_region
          _
        $region24: #{consensus_forward.1} parent=11 // pred_fallthru
          _
        // Predicated region
        $region25: #{consensus_forward.1} parent=11 // pred_check
          %p225 = pneg %p128
        $region26: #{consensus_forward.1} parent=11 // pred_check_branch
          %227 = sbr.rel (%p225) target = $region28
        $region27: #{consensus_forward.1} parent=11 // pred_region
          _
        $region28: #{consensus_forward.1} parent=11 // pred_fallthru
          _
        // Predicated region
        $region29: #{consensus_forward.1} parent=11 // pred_check
          %p228 = pneg %p149
        $region30: #{consensus_forward.1} parent=11 // pred_check_branch
          %230 = sbr.rel (%p228) target = $region32
        $region31: #{consensus_forward.1} parent=11 // pred_region
          _
        $region32: #{consensus_forward.1} parent=11 // pred_fallthru
          _
      $region12: #{consensus_forward.1} parent=5 // pred_fallthru
        _
      %p231 = scmp.lt.s32.totalorder %s18, 2
      // Predicated region
      $region33: #{consensus_forward.1} parent=5 // pred_check
        %p232 = pneg %p231
      $region34: #{consensus_forward.1} parent=5 // pred_check_branch
        %234 = sbr.rel (%p232) target = $region36
      $region35: #{consensus_forward.1} parent=5 // pred_region
        // Predicated region
        $region37: #{consensus_forward.1} parent=35 // pred_check
          %p235 = pneg %p38
        $region38: #{consensus_forward.1} parent=35 // pred_check_branch
          %237 = sbr.rel (%p235) target = $region40
        $region39: #{consensus_forward.1} parent=35 // pred_region
          %p238 = scmp.lt.s32.totalorder %s18, 1
          %s239 = scalar_select %p238, %s18, 1
          %s240 = smul.addr %s239, 8
          %s241 = scalar_lea.vmem %s0, %s240
        $region40: #{consensus_forward.1} parent=35 // pred_fallthru
          _
      $region36: #{consensus_forward.1} parent=5 // pred_fallthru
        _
      %p242 = scmp.le.s32.totalorder 1, %s18
      %p243 = scmp.lt.s32.totalorder %s18, 3
      %p244 = pnand %p242, %p243
      %p245 = pneg %p244
      // Predicated region
      $region41: #{consensus_forward.1} parent=5 // pred_check
        _
      $region42: #{consensus_forward.1} parent=5 // pred_check_branch
        %247 = sbr.rel (%p244) target = $region44
      $region43: #{consensus_forward.1} parent=5 // pred_region
        %s248 = ssub.s32 %s18, 1
        %p249 = scmp.lt.s32.totalorder %s23, 1
        %s250 = scalar_select %p249, %s23, 1
        %s251 = smul.addr %s250, 8
        %s252 = scalar_lea.vmem %s0, %s251
        %p253 = pneg %p44
        %p254 = pneg %p41
        %p255 = pneg %p65
        %p256 = pneg %p62
        %p257 = pneg %p86
        %p258 = pneg %p83
        %p259 = pneg %p107
        %p260 = pneg %p104
        %p261 = pneg %p128
        %p262 = pneg %p125
        %p263 = pneg %p149
        %p264 = pneg %p146
        %p265 = pneg %p175
        %p266 = pneg %p172
        %s267 = sand.u32 %s162, 1
        %s268 = scalar_lea.sflag [#allocation4], %s267
        %s269 = sand.u32 %s162, 1
        %s270 = smul.addr %s269, 8
        %s271 = scalar_lea.vmem [#allocation3], %s270
        %p272 = pneg %p201
        %p273 = pneg %p198
        %p274 = scmp.lt.s32.totalorder %s23, 1
        %s275 = scalar_select %p274, %s23, 1
        %s276 = smul.addr %s275, 8
        %s277 = scalar_lea.vmem %s7, %s276
        %p278 = scmp.lt.s32.totalorder %s23, 1
        %s279 = scalar_select %p278, %s23, 1
        %s280 = smul.addr %s279, 8
        %s281 = scalar_lea.vmem %s0, %s280
        %p282 = scmp.lt.s32.totalorder %s23, 1
        %s283 = scalar_select %p282, %s23, 1
        %s284 = smul.addr %s283, 8
        %s285 = scalar_lea.vmem %s7, %s284
        %v286 = vld [vmem:[%s281] sm:$0xff]
        %v287 = vld [vmem:[%s1] sm:$0xff]
        %v288 = vld [vmem:[%s1 + $0x8] sm:$0xff]
        %v289 = vld [vmem:[%s1 + $0x10] sm:$0xff]
        %v290 = vld [vmem:[%s1 + $0x18] sm:$0xff]
        %v291 = vld [vmem:[%s2] sm:$0x1]
        %v293 = vlaneseq
        %v294 = vshrl.u32 %v293, 7
        %v295 = vsub.s32 0, %v294
        %v296 = vrot.slane %v291, %v295
        %vm298 = vcmask 261120
        %v300 = vsel %vm298, %v286, 0
        %302 = vmatprep.subr.mxu0 0.0
        %303 = vmatpush1.msra.mxu0 0.0
        %304 = vmatprep.subr.mxu0 0.0
        %305 = vmatpush1.msra.mxu0 0.0
        %306 = vmatprep.subr.mxu0 0.0
        %307 = vmatpush1.msra.mxu0 0.0
        %308 = vmatprep.subr.mxu0 0.0
        %309 = vmatpush1.msra.mxu0 0.0
        %310 = vmatprep.subr.mxu0 0.0
        %311 = vmatpush1.msra.mxu0 0.0
        %312 = vmatprep.subr.mxu0 0.0
        %313 = vmatpush1.msra.mxu0 0.0
        %314 = vmatprep.subr.mxu0 0.0
        %315 = vmatpush1.msra.mxu0 0.0
        %316 = vmatprep.subr.mxu0 0.0
        %317 = vmatpush1.msra.mxu0 0.0
        %318 = vmatprep.subr.mxu0 0.0
        %319 = vmatpush1.msra.mxu0 0.0
        %320 = vmatprep.subr.mxu0 0.0
        %321 = vmatpush1.msra.mxu0 0.0
        %322 = vmatprep.subr.mxu0 0.0
        %323 = vmatpush1.msra.mxu0 0.0
        %324 = vmatprep.subr.mxu0 0.0
        %325 = vmatpush1.msra.mxu0 0.0
        %326 = vmatprep.subr.mxu0 0.0
        %327 = vmatpush1.msra.mxu0 %v290
        %328 = vmatprep.subr.mxu0 0.0
        %329 = vmatpush1.msra.mxu0 %v289
        %330 = vmatprep.subr.mxu0 0.0
        %331 = vmatpush1.msra.mxu0 %v288
        %332 = vmatprep.subr.mxu0 0.0
        %333 = vmatpush1.msra.mxu0 %v287
        %334 = vmatprep.subr.mxu0 0.0
        %335 = vmatpush2.msra.mxu0 0.0
        %336 = vmatprep.subr.mxu0 0.0
        %337 = vmatpush2.msra.mxu0 0.0
        %338 = vmatprep.subr.mxu0 0.0
        %339 = vmatpush2.msra.mxu0 0.0
        %340 = vmatprep.subr.mxu0 0.0
        %341 = vmatpush2.msra.mxu0 0.0
        %342 = vmatprep.subr.mxu0 0.0
        %343 = vmatpush2.msra.mxu0 0.0
        %344 = vmatprep.subr.mxu0 0.0
        %345 = vmatpush2.msra.mxu0 0.0
        %346 = vmatprep.subr.mxu0 0.0
        %347 = vmatpush2.msra.mxu0 0.0
        %348 = vmatprep.subr.mxu0 0.0
        %349 = vmatpush2.msra.mxu0 0.0
        %350 = vmatprep.subr.mxu0 0.0
        %351 = vmatpush2.msra.mxu0 0.0
        %352 = vmatprep.subr.mxu0 0.0
        %353 = vmatpush2.msra.mxu0 0.0
        %354 = vmatprep.subr.mxu0 0.0
        %355 = vmatpush2.msra.mxu0 0.0
        %356 = vmatprep.subr.mxu0 0.0
        %357 = vmatpush2.msra.mxu0 0.0
        %358 = vmatprep.subr.mxu0 0.0
        %359 = vmatpush2.msra.mxu0 0.0
        %360 = vmatprep.subr.mxu0 0.0
        %361 = vmatpush2.msra.mxu0 0.0
        %362 = vmatprep.subr.mxu0 0.0
        %363 = vmatpush2.msra.mxu0 0.0
        %364 = vmatprep.subr.mxu0 0.0
        %365 = vmatpush2.msra.mxu0 0.0
        %366 = vmatprep.mubr.f32.mxu0 0.0
        %367 = vmatmul.mubr.f32.gmra.mxu0 %v300
        %v368 = vpop.f32.mrf.mxu0
        %v369 = vadd.f32 %v296, %v368
        %v370 = vpop.f32.mrf.mxu0
        %371 = vdwg.mxu0
        %v372 = vtanh.pop %v369
        %v373 = vld [vmem:[%s3] sm:$0xff]
        %v374 = vld [vmem:[%s3 + $0x8] sm:$0xff]
        %v375 = vld [vmem:[%s3 + $0x10] sm:$0xff]
        %v376 = vld [vmem:[%s3 + $0x18] sm:$0xff]
        %s377 = sld [smem:[#allocation2]]
        %v378 = vstv %s377
        %v380 = vsel %vm298, %v372, 0
        %382 = vmatprep.subr.mxu0 0.0
        %383 = vmatpush1.msra.mxu0 0.0
        %384 = vmatprep.subr.mxu0 0.0
        %385 = vmatpush1.msra.mxu0 0.0
        %386 = vmatprep.subr.mxu0 0.0
        %387 = vmatpush1.msra.mxu0 0.0
        %388 = vmatprep.subr.mxu0 0.0
        %389 = vmatpush1.msra.mxu0 0.0
        %390 = vmatprep.subr.mxu0 0.0
        %391 = vmatpush1.msra.mxu0 0.0
        %392 = vmatprep.subr.mxu0 0.0
        %393 = vmatpush1.msra.mxu0 0.0
        %394 = vmatprep.subr.mxu0 0.0
        %395 = vmatpush1.msra.mxu0 0.0
        %396 = vmatprep.subr.mxu0 0.0
        %397 = vmatpush1.msra.mxu0 0.0
        %398 = vmatprep.subr.mxu0 0.0
        %399 = vmatpush1.msra.mxu0 0.0
        %400 = vmatprep.subr.mxu0 0.0
        %401 = vmatpush1.msra.mxu0 0.0
        %402 = vmatprep.subr.mxu0 0.0
        %403 = vmatpush1.msra.mxu0 0.0
        %404 = vmatprep.subr.mxu0 0.0
        %405 = vmatpush1.msra.mxu0 0.0
        %406 = vmatprep.subr.mxu0 0.0
        %407 = vmatpush1.msra.mxu0 %v376
        %408 = vmatprep.subr.mxu0 0.0
        %409 = vmatpush1.msra.mxu0 %v375
        %410 = vmatprep.subr.mxu0 0.0
        %411 = vmatpush1.msra.mxu0 %v374
        %412 = vmatprep.subr.mxu0 0.0
        %413 = vmatpush1.msra.mxu0 %v373
        %414 = vmatprep.subr.mxu0 0.0
        %415 = vmatpush2.msra.mxu0 0.0
        %416 = vmatprep.subr.mxu0 0.0
        %417 = vmatpush2.msra.mxu0 0.0
        %418 = vmatprep.subr.mxu0 0.0
        %419 = vmatpush2.msra.mxu0 0.0
        %420 = vmatprep.subr.mxu0 0.0
        %421 = vmatpush2.msra.mxu0 0.0
        %422 = vmatprep.subr.mxu0 0.0
        %423 = vmatpush2.msra.mxu0 0.0
        %424 = vmatprep.subr.mxu0 0.0
        %425 = vmatpush2.msra.mxu0 0.0
        %426 = vmatprep.subr.mxu0 0.0
        %427 = vmatpush2.msra.mxu0 0.0
        %428 = vmatprep.subr.mxu0 0.0
        %429 = vmatpush2.msra.mxu0 0.0
        %430 = vmatprep.subr.mxu0 0.0
        %431 = vmatpush2.msra.mxu0 0.0
        %432 = vmatprep.subr.mxu0 0.0
        %433 = vmatpush2.msra.mxu0 0.0
        %434 = vmatprep.subr.mxu0 0.0
        %435 = vmatpush2.msra.mxu0 0.0
        %436 = vmatprep.subr.mxu0 0.0
        %437 = vmatpush2.msra.mxu0 0.0
        %438 = vmatprep.subr.mxu0 0.0
        %439 = vmatpush2.msra.mxu0 0.0
        %440 = vmatprep.subr.mxu0 0.0
        %441 = vmatpush2.msra.mxu0 0.0
        %442 = vmatprep.subr.mxu0 0.0
        %443 = vmatpush2.msra.mxu0 0.0
        %444 = vmatprep.subr.mxu0 0.0
        %445 = vmatpush2.msra.mxu0 0.0
        %446 = vmatprep.mubr.f32.mxu0 0.0
        %447 = vmatmul.mubr.f32.gmra.mxu0 %v380
        %v448 = vpop.f32.mrf.mxu0
        %v449 = vadd.f32 %v378, %v448
        %v450 = vpop.f32.mrf.mxu0
        %451 = vdwg.mxu0
        %v452 = vmul.f32 %v449, 10.0
        %v453 = vlaneseq
        %v454 = vand.u32 %v453, 127
        %vm455 = vcmp.lt.s32.totalorder %v454, 8
        %v456 = vsel %vm455, %v452, -1e+30
        %457 = vmax.xlane.f32.xlu0 %v456
        %v458 = vpop.xlane.xlu0 %457
        %v459 = vsub.f32 %v456, %v458
        %v460 = vmul.f32 %v459, 1.442695
        %v461 = vpow.pop %v460
        %462 = vadd.xlane.f32.xlu0 %v461
        %v463 = vpop.xlane.xlu0 %462
        %v464 = vrcp.pop %v463
        %v465 = vmul.f32 %v461, %v464
        %v466 = vld [vmem:[%s4] sm:$0xff]
        %v467 = vld [vmem:[%s4 + $0x8] sm:$0xff]
        %v468 = vld [vmem:[%s4 + $0x10] sm:$0xff]
        %v469 = vld [vmem:[%s4 + $0x18] sm:$0xff]
        %v470 = vld [vmem:[%s4 + $0x20] sm:$0xff]
        %v471 = vld [vmem:[%s4 + $0x28] sm:$0xff]
        %v472 = vld [vmem:[%s4 + $0x30] sm:$0xff]
        %v473 = vld [vmem:[%s4 + $0x38] sm:$0xff]
        %v474 = vld [vmem:[%s4 + $0x40] sm:$0xff]
        %v475 = vld [vmem:[%s4 + $0x48] sm:$0xff]
        %v476 = vld [vmem:[%s4 + $0x50] sm:$0xff]
        %v477 = vld [vmem:[%s4 + $0x58] sm:$0xff]
        %v478 = vld [vmem:[%s4 + $0x60] sm:$0xff]
        %v479 = vld [vmem:[%s4 + $0x68] sm:$0xff]
        %v480 = vld [vmem:[%s4 + $0x70] sm:$0xff]
        %v481 = vld [vmem:[%s4 + $0x78] sm:$0xff]
        %482 = vmatprep.subr.mxu0 0.0
        %483 = vmatpush1.msra.mxu0 %v481
        %484 = vmatprep.subr.mxu0 0.0
        %485 = vmatpush1.msra.mxu0 %v480
        %486 = vmatprep.subr.mxu0 0.0
        %487 = vmatpush1.msra.mxu0 %v479
        %488 = vmatprep.subr.mxu0 0.0
        %489 = vmatpush1.msra.mxu0 %v478
        %490 = vmatprep.subr.mxu0 0.0
        %491 = vmatpush1.msra.mxu0 %v477
        %492 = vmatprep.subr.mxu0 0.0
        %493 = vmatpush1.msra.mxu0 %v476
        %494 = vmatprep.subr.mxu0 0.0
        %495 = vmatpush1.msra.mxu0 %v475
        %496 = vmatprep.subr.mxu0 0.0
        %497 = vmatpush1.msra.mxu0 %v474
        %498 = vmatprep.subr.mxu0 0.0
        %499 = vmatpush1.msra.mxu0 %v473
        %500 = vmatprep.subr.mxu0 0.0
        %501 = vmatpush1.msra.mxu0 %v472
        %502 = vmatprep.subr.mxu0 0.0
        %503 = vmatpush1.msra.mxu0 %v471
        %504 = vmatprep.subr.mxu0 0.0
        %505 = vmatpush1.msra.mxu0 %v470
        %506 = vmatprep.subr.mxu0 0.0
        %507 = vmatpush1.msra.mxu0 %v469
        %508 = vmatprep.subr.mxu0 0.0
        %509 = vmatpush1.msra.mxu0 %v468
        %510 = vmatprep.subr.mxu0 0.0
        %511 = vmatpush1.msra.mxu0 %v467
        %512 = vmatprep.subr.mxu0 0.0
        %513 = vmatpush1.msra.mxu0 %v466
        %514 = vmatprep.subr.mxu0 0.0
        %515 = vmatpush2.msra.mxu0 0.0
        %516 = vmatprep.subr.mxu0 0.0
        %517 = vmatpush2.msra.mxu0 0.0
        %518 = vmatprep.subr.mxu0 0.0
        %519 = vmatpush2.msra.mxu0 0.0
        %520 = vmatprep.subr.mxu0 0.0
        %521 = vmatpush2.msra.mxu0 0.0
        %522 = vmatprep.subr.mxu0 0.0
        %523 = vmatpush2.msra.mxu0 0.0
        %524 = vmatprep.subr.mxu0 0.0
        %525 = vmatpush2.msra.mxu0 0.0
        %526 = vmatprep.subr.mxu0 0.0
        %527 = vmatpush2.msra.mxu0 0.0
        %528 = vmatprep.subr.mxu0 0.0
        %529 = vmatpush2.msra.mxu0 0.0
        %530 = vmatprep.subr.mxu0 0.0
        %531 = vmatpush2.msra.mxu0 0.0
        %532 = vmatprep.subr.mxu0 0.0
        %533 = vmatpush2.msra.mxu0 0.0
        %534 = vmatprep.subr.mxu0 0.0
        %535 = vmatpush2.msra.mxu0 0.0
        %536 = vmatprep.subr.mxu0 0.0
        %537 = vmatpush2.msra.mxu0 0.0
        %538 = vmatprep.subr.mxu0 0.0
        %539 = vmatpush2.msra.mxu0 0.0
        %540 = vmatprep.subr.mxu0 0.0
        %541 = vmatpush2.msra.mxu0 0.0
        %542 = vmatprep.subr.mxu0 0.0
        %543 = vmatpush2.msra.mxu0 0.0
        %544 = vmatprep.subr.mxu0 0.0
        %545 = vmatpush2.msra.mxu0 0.0
        %546 = vmatprep.mubr.f32.mxu0 0.0
        %547 = vmatmul.mubr.f32.gmra.mxu0 %v465
        %v548 = vpop.f32.mrf.mxu0
        %v549 = vadd.f32 0.0, %v548
        %v550 = vpop.f32.mrf.mxu0
        %551 = vdwg.mxu0
        %v552 = vmul.f32 %v549, %v549
        %553 = vadd.xlane.f32.xlu0 %v552
        %v554 = vpop.xlane.xlu0 %553
        %v555 = vadd.f32 %v554, 1e-08
        %v556 = vrsqrt.pop %v555
        %v557 = vmul.f32 %v549, %v556
        %558 = vst [vmem:[%s271] sm:$0xff] %v557
        %559 = vst [vmem:[%s285] sm:$0xff] %v465
        %s560 = sand.u32 %s162, 1
        %s561 = scalar_lea.sflag [#allocation4], %s560
        %s562 = sand.u32 %s162, 1
        %s563 = smul.addr %s562, 8
        %s564 = scalar_lea.vmem [#allocation3], %s563
        %p565 = scmp.lt.s32.totalorder %s23, 1
        %s566 = scalar_select %p565, %s23, 1
        %s567 = smul.addr %s566, 8
        %s568 = scalar_lea.vmem %s7, %s567
        // Predicated region
        $region45: #{consensus_forward.1} parent=43 // pred_check
          %p569 = pneg %p172
        $region46: #{consensus_forward.1} parent=43 // pred_check_branch
          %571 = sbr.rel (%p569) target = $region48
        $region47: #{consensus_forward.1} parent=43 // pred_region
          %s573 = ssub.s32 128, 128
          %574 = vsyncadd %s561, %s573
          %s575 = smul.addr %s23, 128
          %s576 = scalar_lea.hbm %s6, %s575
          %s578 = sshll.u32 %s564, 4
          %s579 = int_to_ptr.vmem [resolvable:$true] %s578
          %581 = dma.vmem_to_hbm [thread:$0]  %s579, 128, %s576, %s561
        $region48: #{consensus_forward.1} parent=43 // pred_fallthru
          _
        // Predicated region
        $region49: #{consensus_forward.1} parent=43 // pred_check
          %p582 = pneg %p198
        $region50: #{consensus_forward.1} parent=43 // pred_check_branch
          %584 = sbr.rel (%p582) target = $region52
        $region51: #{consensus_forward.1} parent=43 // pred_region
          _
        $region52: #{consensus_forward.1} parent=43 // pred_fallthru
          _
      $region44: #{consensus_forward.1} parent=5 // pred_fallthru
        _
      %p585 = scmp.le.s32.totalorder 2, %s18
      // Predicated region
      $region53: #{consensus_forward.1} parent=5 // pred_check
        %p586 = pneg %p585
      $region54: #{consensus_forward.1} parent=5 // pred_check_branch
        %588 = sbr.rel (%p586) target = $region56
      $region55: #{consensus_forward.1} parent=5 // pred_region
        %s589 = ssub.s32 %s18, 2
        // Predicated region
        $region57: #{consensus_forward.1} parent=55 // pred_check
          %p590 = pneg %p178
        $region58: #{consensus_forward.1} parent=55 // pred_check_branch
          %592 = sbr.rel (%p590) target = $region60
        $region59: #{consensus_forward.1} parent=55 // pred_region
          %s593 = sand.u32 %s163, 1
          %s594 = scalar_lea.sflag [#allocation4], %s593
          %s595 = sand.u32 %s163, 1
          %s596 = smul.addr %s595, 8
          %s597 = scalar_lea.vmem [#allocation3], %s596
          %598 = dma.done %s594, 128
        $region60: #{consensus_forward.1} parent=55 // pred_fallthru
          _
        // Predicated region
        $region61: #{consensus_forward.1} parent=55 // pred_check
          %p599 = pneg %p204
        $region62: #{consensus_forward.1} parent=55 // pred_check_branch
          %601 = sbr.rel (%p599) target = $region64
        $region63: #{consensus_forward.1} parent=55 // pred_region
          %p602 = scmp.lt.s32.totalorder %s24, 1
          %s603 = scalar_select %p602, %s24, 1
          %s604 = smul.addr %s603, 8
          %s605 = scalar_lea.vmem %s7, %s604
        $region64: #{consensus_forward.1} parent=55 // pred_fallthru
          _
      $region56: #{consensus_forward.1} parent=5 // pred_fallthru
        _
    $region6: #{consensus_forward.1} parent=1 // loop_footer
      %s22 = sadd.s32 1, %s18
    $region7: #{consensus_forward.1} parent=1 // loop_footer_branch
      %17 = sbr.rel target = $region3
    $region8: #{consensus_forward.1} parent=1 // loop_exit
      _
    %606 = vsyncpa [#allocation4], 1
    %s607 = scalar_lea.sflag [#allocation4], 1
    %608 = vsyncpa %s607, 1

</llo_original>
